<compile_context>
chip_gen: v7x
topology: tpu7x:2x2x1
jax: 0.10.0
libtpu: 0.0.40
codegen_flags: <defaults>
</compile_context>

<pallas_src>
import jax
import jax.numpy as jnp
from jax.experimental import pallas as pl
from jax.experimental.pallas import tpu as pltpu


# ----------------------------------------------------------------------------
# pltpu.roll convention, resolved eagerly at import time.
# ----------------------------------------------------------------------------
def _probe_roll_convention() -> bool:
    """True iff pltpu.roll matches np.roll: out[..., i] = in[..., i - shift]."""

    def k(x_ref, o_ref):
        o_ref[...] = pltpu.roll(x_ref[...], 1, 1)

    x = jax.lax.broadcasted_iota(jnp.float32, (8, 128), 1)
    r = jax.device_get(
        pl.pallas_call(k, out_shape=jax.ShapeDtypeStruct((8, 128), jnp.float32))(x))
    v = float(r[0, 0])
    if v == 127.0:
        return True
    if v == 1.0:
        return False
    raise RuntimeError(f"Unexpected pltpu.roll semantics (probe value {v}).")


_ROLL_LIKE_NUMPY = _probe_roll_convention()


# ----------------------------------------------------------------------------
# Fused block kernel:
#   conv3x3 -> BN -> ReLU -> conv3x3 -> BN -> (+x) -> ReLU -> maxpool(p, p)
# Data layout inside the kernel: (channels, nb * H * W) with nb images packed
# along the 128-wide lane axis (image n occupies lanes [n*H*W, (n+1)*H*W)).
# ----------------------------------------------------------------------------
def _make_block_kernel(H, W, nb, cins, Cout, pool, residual, roll_like_np):
    HW = H * W
    HWt = nb * HW
    p = pool
    Ho, Wo = H // p, W // p
    n_in = len(cins)

    def roll_by(v, d):
        # out[:, l] = v[:, (l + d) mod HWt]
        d = d % HWt
        if d == 0:
            return v
        shift = (HWt - d) if roll_like_np else d
        return pltpu.roll(v, shift, 1)

    def kernel(*refs):
        x_refs = refs[:n_in]
        w1_refs = refs[n_in:2 * n_in]
        w2_ref = refs[2 * n_in]
        bn_ref = refs[2 * n_in + 1]
        o_ref = refs[2 * n_in + 2]

        xs32 = [x_refs[j][0] for j in range(n_in)]        # (cin_j, HWt) f32

        # ---- hoisted boundary predicates (shared by both convs) ------------
        lane = jax.lax.broadcasted_iota(jnp.int32, (1, HWt), 1)
        img = lane // HW
        rim = lane - img * HW                             # within-image offset
        row = rim // W
        col = rim - row * W
        row_ok = {-1: row >= 1, 0: None, 1: row <= H - 2}
        col_ok = {-1: col >= 1, 0: None, 1: col <= W - 2}

        def tap(v, oy, ox):
            # out[:, l] = v[:, l + oy*W + ox], zero outside the image.
            s = roll_by(v, oy * W + ox)
            m = row_ok[oy]
            c = col_ok[ox]
            if m is None:
                m = c
            elif c is not None:
                m = jnp.logical_and(m, c)
            if m is not None:
                s = jnp.where(m, s, 0.0)
            return s.astype(jnp.bfloat16)

        def conv(pairs):
            # pairs: list of (value (c_j, HWt) f32, weight ref (9, Cout, c_j) bf16)
            acc = None
            for dy in range(3):
                for dx in range(3):
                    ti = dy * 3 + dx
                    for v, w_ref in pairs:
                        d = jnp.dot(w_ref[ti], tap(v, dy - 1, dx - 1),
                                    preferred_element_type=jnp.float32)
                        acc = d if acc is None else acc + d
            return acc                                    # (Cout, HWt) f32

        bn = bn_ref[...]                                  # (Cout, 4) f32
        s1, b1 = bn[:, 0:1], bn[:, 1:2]
        s2, b2 = bn[:, 2:3], bn[:, 3:4]

        # ---- conv1 -> BN1 -> ReLU ------------------------------------------
        y1 = jnp.maximum(conv(list(zip(xs32, w1_refs))) * s1 + b1, 0.0)

        # ---- conv2 -> BN2 (-> +x) -> ReLU -----------------------------------
        y2 = conv([(y1, w2_ref)]) * s2 + b2
        if residual:
            y2 = y2 + xs32[0]
        y2 = jnp.maximum(y2, 0.0)

        # ---- max pool (p x p, stride p): roll+max, then one compaction -------
        vmax = y2
        for di in range(1, p):
            vmax = jnp.maximum(vmax, roll_by(y2, di * W))
        hmax = vmax
        for dj in range(1, p):
            hmax = jnp.maximum(hmax, roll_by(vmax, dj))
        # keep rows io*p (first W lanes of each p*W group), then columns jo*p
        rows = hmax.reshape(Cout, nb * Ho, p * W)[:, :, 0:W]
        out = rows.reshape(Cout, nb * Ho * Wo, p)[:, :, 0]
        o_ref[0] = out                                    # (Cout, nb*Ho*Wo)

    return kernel


def pallas_fused_block(xs, params, H, W, *, pool, residual, nb):
    """Fused double_cnn_max_pool / ResBlock on lane-packed activations.

    xs     : list of (G, cin_j, nb*H*W) float32 arrays (packed layout); a list
             of length 2 fuses the channel concat of the original module.
    returns: (G, Cout, nb*(H//pool)*(W//pool)) float32, same packed layout.
    """
    w1, s1, b1, w2, s2, b2 = params
    cins = [int(x.shape[1]) for x in xs]
    Ctot = sum(cins)
    G = xs[0].shape[0]
    HWt = nb * H * W
    for x in xs:
        assert x.shape[0] == G and x.shape[2] == HWt
    assert w1.shape == (3, 3, Ctot, w1.shape[3])
    Cout = w1.shape[3]
    assert H % pool == 0 and W % pool == 0
    if residual:
        assert len(xs) == 1 and cins[0] == Cout, "residual needs Cin == Cout"
    Ho, Wo = H // pool, W // pool

    # (3,3,Cin,Cout) HWIO -> (9, Cout, Cin) bf16, split per fused input so the
    # kernel never slices weights.
    w1k = jnp.transpose(w1.reshape(9, Ctot, Cout), (0, 2, 1)).astype(jnp.bfloat16)
    w1_parts, off = [], 0
    for c in cins:
        w1_parts.append(w1k[:, :, off:off + c])
        off += c
    w2k = jnp.transpose(w2.reshape(9, Cout, Cout), (0, 2, 1)).astype(jnp.bfloat16)
    bn = jnp.stack([s1, b1, s2, b2], axis=1).astype(jnp.float32)     # (Cout, 4)

    kernel = _make_block_kernel(H, W, nb, cins, Cout, pool, residual,
                                _ROLL_LIKE_NUMPY)

    in_specs = [pl.BlockSpec((1, c, HWt), lambda g: (g, 0, 0)) for c in cins]
    in_specs += [pl.BlockSpec((9, Cout, c), lambda g: (0, 0, 0)) for c in cins]
    in_specs += [
        pl.BlockSpec((9, Cout, Cout), lambda g: (0, 0, 0)),
        pl.BlockSpec((Cout, 4), lambda g: (0, 0)),
    ]

    operands = [x.astype(jnp.float32) for x in xs] + w1_parts + [w2k, bn]

    return pl.pallas_call(
        kernel,
        out_shape=jax.ShapeDtypeStruct((G, Cout, nb * Ho * Wo), jnp.float32),
        grid_spec=pltpu.PrefetchScalarGridSpec(
            num_scalar_prefetch=0,
            grid=(G,),
            in_specs=in_specs,
            out_specs=pl.BlockSpec((1, Cout, nb * Ho * Wo), lambda g: (g, 0, 0)),
        ),
        compiler_params=pltpu.CompilerParams(
            dimension_semantics=("parallel",),   # image groups are independent
        ),
    )(*operands)


# ----------------------------------------------------------------------------
# Packed-layout plumbing
# ----------------------------------------------------------------------------
def convert_to_packed(x, nb):
    """(B, D, H, W, C) -> NCHW -> (G, C, nb*H*W) with nb images on the lane axis."""
    x = jnp.moveaxis(x, -1, -3)                                     # (B, D, C, H, W)
    x = x.reshape(-1, x.shape[-3], x.shape[-2] * x.shape[-1])       # (N, C, HW)
    N, C, HW = x.shape
    assert N % nb == 0
    G = N // nb
    return x.reshape(G, nb, C, HW).transpose(0, 2, 1, 3).reshape(G, C, nb * HW)


def unpack_to_NCHW(h, nb, Ho, Wo):
    G, C, L = h.shape
    assert L == nb * Ho * Wo
    h = h.reshape(G, C, nb, Ho * Wo).transpose(0, 2, 1, 3)
    return h.reshape(G * nb, C, Ho, Wo)


# ----------------------------------------------------------------------------
# CompensationBranch.forward
# ----------------------------------------------------------------------------
def compensation_branch_forward(xs, branch_params, res_params, *, nb=None):
    n_iter = len(branch_params)
    assert len(xs) == n_iter, "Input must have same length as number of iterations."
    B, D, H, W, C = xs[0].shape
    N = B * D
    if nb is None:
        # pack 2 images per grid step when it still leaves >= 2 grid steps
        nb = 2 if (N % 2 == 0 and N >= 4) else 1
    assert N % nb == 0

    # branch_layers[0]
    h = pallas_fused_block([convert_to_packed(xs[0], nb)], branch_params[0],
                           H, W, pool=2, residual=False, nb=nb)
    Hh, Wh = H // 2, W // 2
    for k in range(n_iter - 1):
        # residual_layers[k]: ResBlock with maxpool 2**(k+1)
        r = pallas_fused_block([convert_to_packed(xs[k + 1], nb)], res_params[k],
                               H, W, pool=2 ** (k + 1), residual=True, nb=nb)
        # branch_layers[k+1], channel concat [h, r] fused into the block
        h = pallas_fused_block([h, r], branch_params[k + 1],
                               Hh, Wh, pool=2, residual=False, nb=nb)
        Hh, Wh = Hh // 2, Wh // 2
    # return_NCHW=True
    return unpack_to_NCHW(h, nb, Hh, Wh)


# ----------------------------------------------------------------------------
# Pure-JAX reference (correctness check only)
# ----------------------------------------------------------------------------
def _to_nchw(x):
    x = jnp.moveaxis(x, -1, -3)
    return x.reshape(-1, *x.shape[-3:])


def _ref_block(x, params, *, pool, residual):
    w1, s1, b1, w2, s2, b2 = params

    def conv(v, w):
        return jax.lax.conv_general_dilated(
            v, w, (1, 1), ((1, 1), (1, 1)),
            dimension_numbers=("NCHW", "HWIO", "NCHW"),
            precision=jax.lax.Precision.HIGHEST)

    def bn(v, s, b):
        return v * s[None, :, None, None] + b[None, :, None, None]

    y = jnp.maximum(bn(conv(x, w1), s1, b1), 0.0)
    y = bn(conv(y, w2), s2, b2)
    if residual:
        y = y + x
    y = jnp.maximum(y, 0.0)
    return jax.lax.reduce_window(y, -jnp.inf, jax.lax.max,
                                 (1, 1, pool, pool), (1, 1, pool, pool), "VALID")


def ref_compensation_branch_forward(xs, branch_params, res_params):
    n_iter = len(branch_params)
    h = _ref_block(_to_nchw(xs[0]), branch_params[0], pool=2, residual=False)
    for k in range(n_iter - 1):
        r = _ref_block(_to_nchw(xs[k + 1]), res_params[k],
                       pool=2 ** (k + 1), residual=True)
        h = _ref_block(jnp.concatenate([h, r], axis=1), branch_params[k + 1],
                       pool=2, residual=False)
    return h


# ----------------------------------------------------------------------------
# Deterministic synthetic parameters (no checkpoint loading)
# ----------------------------------------------------------------------------
def _make_block_params(key, cin, cout, eps=1e-5):
    ks = jax.random.split(key, 10)
    w1 = 0.1 * jax.random.normal(ks[0], (3, 3, cin, cout), jnp.float32)   # HWIO
    w2 = 0.1 * jax.random.normal(ks[1], (3, 3, cout, cout), jnp.float32)

    def bn(k0, k1, k2, k3, c):
        gamma = 1.0 + 0.1 * jax.random.normal(k0, (c,), jnp.float32)
        beta = 0.1 * jax.random.normal(k1, (c,), jnp.float32)
        mean = 0.05 * jax.random.normal(k2, (c,), jnp.float32)
        var = 0.5 + jax.random.uniform(k3, (c,), jnp.float32)
        scale = gamma / jnp.sqrt(var + eps)
        shift = beta - mean * scale
        return scale, shift

    s1, b1 = bn(ks[2], ks[3], ks[4], ks[5], cout)
    s2, b2 = bn(ks[6], ks[7], ks[8], ks[9], cout)
    return (w1, s1, b1, w2, s2, b2)


if __name__ == "__main__":
    key = jax.random.PRNGKey(0)
    B, D, H, W, C = 2, 2, 32, 32, 3          # lensless inputs: (B, D, H, W, C)
    nc = [8, 16]                             # channels per compensation layer
    n_iter = len(nc)

    k_in, k_par = jax.random.split(key)
    in_keys = jax.random.split(k_in, n_iter)
    xs = [jax.random.normal(in_keys[i], (B, D, H, W, C), jnp.float32)
          for i in range(n_iter)]

    par_keys = jax.random.split(k_par, 2 * n_iter - 1)
    branch_params = [_make_block_params(par_keys[0], C, nc[0])]
    branch_params += [_make_block_params(par_keys[i + 1], nc[i] + C, nc[i + 1])
                      for i in range(n_iter - 1)]
    res_params = [_make_block_params(par_keys[n_iter + i], C, C)
                  for i in range(n_iter - 1)]

    out = compensation_branch_forward(xs, branch_params, res_params)
    out = jax.block_until_ready(out)

    ref = ref_compensation_branch_forward(xs, branch_params, res_params)
    ref = jax.block_until_ready(ref)

    expected_shape = (B * D, nc[-1], H // (2 ** n_iter), W // (2 ** n_iter))
    assert out.shape == expected_shape, (out.shape, expected_shape)
    max_err = float(jnp.max(jnp.abs(out - ref)))
    rel_err = float(jnp.linalg.norm(out - ref) /
                    (jnp.linalg.norm(ref) + 1e-6))
    # bf16 MXU operands with f32 accumulation (per perf guidance); tolerances
    # sized accordingly, still far below what any structural bug would produce.
    assert max_err < 1e-1 and rel_err < 1e-2, (max_err, rel_err)
    print("KERNEL_OK")
</pallas_src>

<mosaic_0001>
module attributes {stable_mosaic.version = 11 : i64} {
  func.func @k(%arg0: memref<8x128xf32, #tpu.memory_space<vmem>>, %arg1: memref<8x128xf32, #tpu.memory_space<vmem>>) attributes {dimension_semantics = [], scalar_prefetch = 0 : i64, scratch_operands = 0 : i64, tpu.core_type = #tpu.core_type<tc>} {
    %c0 = arith.constant 0 : index
    %c0_0 = arith.constant 0 : index
    %0 = vector.load %arg0[%c0, %c0_0] : memref<8x128xf32, #tpu.memory_space<vmem>>, vector<8x128xf32>
    %c1_i32 = arith.constant 1 : i32
    %1 = tpu.dynamic_rotate %0 by %c1_i32 dim 1 : vector<8x128xf32>, i32 -> vector<8x128xf32>
    %c0_1 = arith.constant 0 : index
    %c0_2 = arith.constant 0 : index
    %2 = vector.load %arg1[%c0_1, %c0_2] : memref<8x128xf32, #tpu.memory_space<vmem>>, vector<8x128xf32>
    tpu.vector_store %arg1[%c0_1, %c0_2], %1 {strides = array<i32>} : memref<8x128xf32, #tpu.memory_space<vmem>>, vector<8x128xf32>,
    return
  }
}

</mosaic_0001>

<llo_original>
// kernel: tpu_custom_call.1
$region0: #{tpu_custom_call.1}
  #allocation0 [shape = 'u32[]', space=smem, size = 0x4, offset = 0x4, fixed_abs, tag = 'smem constant byte address 0x4 - core index']
  #allocation1 [shape = 'u32[144,128]{1,0:T(1,128)}', space=vmem, size = 0x12000, scoped, tag = 'internal scratch']
  %s0 = inlined_call_operand.hbm [shape: f32[8,128], index: 0, kind: input, shape index: {}]
  %s1 = inlined_call_operand.hbm [shape: f32[8,128], index: 1, kind: output, shape index: {}]
  %s2 = sld [smem:[#allocation0]]
  $region18: #{tpu_custom_call.1} parent=0
    _
  %s4 = ssub.s32 1, %s2
  %s5 = scalar_select 0, %s4, %s2
  $region1: #{tpu_custom_call.1} parent=0
    #allocation2 [shape = 'u8[4096]{0}', space=vmem, size = 0x1000, scoped, tag = 'input window, operand 0, single buffered']
    #allocation3 [shape = 's32[1]{0}', space=sflag, size = 0x4, scoped, tag = 'scoped memory for tpu_custom_call.1']
    #allocation4 [shape = 's32[1]{0}', space=sflag, size = 0x4, scoped, tag = 'scoped memory for tpu_custom_call.1']
    #allocation5 [shape = 'u8[4096]{0}', space=vmem, size = 0x1000, scoped, tag = 'output window, operand 0, single buffered']
    %6 = vsyncpa [#allocation3], 0
    %7 = vsyncpa [#allocation4], 0
    // Predicated region
    $region2: #{tpu_custom_call.1} parent=1 // pred_check
      _
    $region3: #{tpu_custom_call.1} parent=1 // pred_check_branch
      %9 = sbr.rel (0) target = $region5
    $region4: #{tpu_custom_call.1} parent=1 // pred_region
      %s11 = ssub.s32 128, 128
      %12 = vsyncadd [#allocation3], %s11
      %s14 = sshll.u32 [#allocation2], 4
      %s15 = int_to_ptr.vmem [resolvable:$true] %s14
      %17 = dma.hbm_to_vmem [thread:$0]  %s0, 128, %s15, [#allocation3]
    $region5: #{tpu_custom_call.1} parent=1 // pred_fallthru
      _
    // Predicated region
    $region6: #{tpu_custom_call.1} parent=1 // pred_check
      _
    $region7: #{tpu_custom_call.1} parent=1 // pred_check_branch
      %19 = sbr.rel (0) target = $region9
    $region8: #{tpu_custom_call.1} parent=1 // pred_region
      %20 = dma.done [#allocation3], 128
    $region9: #{tpu_custom_call.1} parent=1 // pred_fallthru
      _
    %v21 = vld [vmem:[#allocation2] sm:$0xff]
    %22 = vrot.lane.b32.xlu0 %v21, 1
    %v23 = vpop.permute.xlu0 %22
    %24 = vst [vmem:[#allocation5] sm:$0xff] %v23
    // Predicated region
    $region10: #{tpu_custom_call.1} parent=1 // pred_check
      _
    $region11: #{tpu_custom_call.1} parent=1 // pred_check_branch
      %26 = sbr.rel (0) target = $region13
    $region12: #{tpu_custom_call.1} parent=1 // pred_region
      %s28 = ssub.s32 128, 128
      %29 = vsyncadd [#allocation4], %s28
      %s31 = sshll.u32 [#allocation5], 4
      %s32 = int_to_ptr.vmem [resolvable:$true] %s31
      %34 = dma.vmem_to_hbm [thread:$0]  %s32, 128, %s1, [#allocation4]
    $region13: #{tpu_custom_call.1} parent=1 // pred_fallthru
      _
    // Predicated region
    $region14: #{tpu_custom_call.1} parent=1 // pred_check
      _
    $region15: #{tpu_custom_call.1} parent=1 // pred_check_branch
      %36 = sbr.rel (0) target = $region17
    $region16: #{tpu_custom_call.1} parent=1 // pred_region
      %37 = dma.done [#allocation4], 128
    $region17: #{tpu_custom_call.1} parent=1 // pred_fallthru
      _
    %38 = vsyncpa [#allocation3], 1
    %39 = vsyncpa [#allocation4], 1

</llo_original>
